<compile_context>
chip_gen: v5e
topology: v5e:2x2
jax: 0.10.0
libtpu: 0.0.40
codegen_flags: <defaults>
</compile_context>

<pallas_src>
import functools

import jax
import jax.numpy as jnp
import numpy as np
from jax.experimental import pallas as pl


def _gcn_kernel(x_ref, a_ref, wt_ref, gamma_ref, beta_ref, *out_refs,
                normalize_adj: bool):
    A = a_ref[...].astype(jnp.float32)          # (B, N, N)
    x = x_ref[...].astype(jnp.float32)          # (B, N, Fin)
    B, N, Fin = x.shape

    if normalize_adj:
        y_ref, a_out_ref = out_refs
        # Adjacency row-normalization: A / (row_sum + 1e-7)
        row_sum = jnp.sum(A, axis=2, keepdims=True) + 1e-07        # (B, N, 1)
        # exact reciprocal (approx=True would trip the 1e-5 A tolerance)
        A = A * pl.reciprocal(row_sum, approx=False)
        a_out_ref[...] = A.astype(a_out_ref.dtype)
    else:
        # is_norm=True: A is unused/unchanged -> wrapper aliases it through,
        # no (B,N,N) writeback from the kernel.
        (y_ref,) = out_refs

    # ---- aggregation: h[b] = A[b] @ x[b] (batched MXU matmul) ----------------
    h = jnp.einsum('bnm,bmf->bnf', A, x,
                   preferred_element_type=jnp.float32)              # (B, N, Fin)

    # ---- Linear (no bias: exactly cancelled by training-mode BN mean) --------
    # Merge (B, N) -> B*N: N % 8 == 0 so this is a layout-free view; the Linear
    # becomes one 2-D MXU matmul and y stays 2-D, lane-dense (last dim = Fout).
    h2 = h.reshape(B * N, Fin)
    wt = wt_ref[...].astype(jnp.float32)                            # (Fin, Fout)
    y = jnp.dot(h2, wt, preferred_element_type=jnp.float32)         # (B*N, Fout)

    # ---- BatchNorm1d over features, batch stats over all (batch, node) rows --
    # One reduction pass (sum + sum of squares), one fused scale/shift pass.
    inv_cnt = 1.0 / (B * N)
    s1 = jnp.sum(y, axis=0, keepdims=True)                          # (1, Fout)
    s2 = jnp.sum(y * y, axis=0, keepdims=True)                      # (1, Fout)
    mean = s1 * inv_cnt
    var = s2 * inv_cnt - mean * mean                                # biased var
    scale = gamma_ref[...] * jax.lax.rsqrt(var + 1e-5)              # (1, Fout)
    shift = beta_ref[...] - mean * scale                            # (1, Fout)
    y_ref[...] = (y * scale + shift).astype(y_ref.dtype)


def gcn_layer(x, A, is_norm, W, b=None, gamma=None, beta=None):
    """Forward of GCN_Layer (bnorm=True, activation/dropout=None).

    Returns [y, A_used, True], matching the PyTorch module.
    `b` is accepted for interface parity but intentionally unused: under
    training-mode BatchNorm the per-feature bias is exactly cancelled by the
    mean subtraction.
    """
    del b
    B, N, Fin = x.shape
    Fout = W.shape[0]

    wt = jnp.asarray(W).T                        # (Fin, Fout), XLA-side (free)
    g2 = jnp.asarray(gamma).reshape(1, Fout)
    be2 = jnp.asarray(beta).reshape(1, Fout)

    normalize_adj = not bool(is_norm)            # static Python branch

    out_shapes = [jax.ShapeDtypeStruct((B * N, Fout), x.dtype)]     # lane-dense y
    if normalize_adj:
        out_shapes.append(jax.ShapeDtypeStruct((B, N, N), A.dtype))

    outs = pl.pallas_call(
        functools.partial(_gcn_kernel, normalize_adj=normalize_adj),
        out_shape=tuple(out_shapes),
    )(x, A, wt, g2, be2)

    y = outs[0].reshape(B, N, Fout)              # free HBM-level reshape
    A_used = outs[1] if normalize_adj else A     # alias A through when is_norm
    return [y, A_used, True]


def gcn_layer_ref(x, A, is_norm, W, b, gamma, beta):
    """Pure-JAX reference matching the PyTorch module (training-mode BN, with bias)."""
    if not is_norm:
        A = A / (jnp.sum(A, axis=2, keepdims=True) + 1e-07)
    h = jnp.einsum('bnm,bmf->bnf', A, x)
    y = h @ W.T + b
    mean = jnp.mean(y, axis=(0, 1), keepdims=True)
    var = jnp.mean((y - mean) ** 2, axis=(0, 1), keepdims=True)
    y = (y - mean) / jnp.sqrt(var + 1e-5) * gamma + beta
    return [y, A, True]


if __name__ == "__main__":
    # TPU-friendly small shapes: node count and out-features are 128 so every
    # output store is lane-dense (no masked vst), N % 8 == 0 keeps the in-kernel
    # (B,N)->B*N merge layout-free.
    B, N, Fin, Fout = 2, 128, 64, 128

    key = jax.random.PRNGKey(0)
    kx, ka, kw, kb, kg, kbe = jax.random.split(key, 6)

    x = jax.random.normal(kx, (B, N, Fin), dtype=jnp.float32)
    # Non-negative adjacency so row-normalization is well behaved.
    A = jax.random.uniform(ka, (B, N, N), dtype=jnp.float32)

    bound = 1.0 / np.sqrt(Fin)
    W = jax.random.uniform(kw, (Fout, Fin), dtype=jnp.float32,
                           minval=-bound, maxval=bound)
    b = jax.random.uniform(kb, (Fout,), dtype=jnp.float32,
                           minval=-bound, maxval=bound)
    gamma = jax.random.uniform(kg, (Fout,), dtype=jnp.float32,
                               minval=0.5, maxval=1.5)
    beta = 0.1 * jax.random.normal(kbe, (Fout,), dtype=jnp.float32)

    for is_norm in (False, True):
        y, A_out, flag = gcn_layer(x, A, is_norm, W, b, gamma, beta)
        jax.block_until_ready(y)
        jax.block_until_ready(A_out)

        y_ref, A_ref, _ = gcn_layer_ref(x, A, is_norm, W, b, gamma, beta)
        np.testing.assert_allclose(np.asarray(y), np.asarray(y_ref),
                                   atol=2e-4, rtol=2e-3)
        np.testing.assert_allclose(np.asarray(A_out), np.asarray(A_ref),
                                   atol=1e-5, rtol=1e-5)
        assert flag is True
        if is_norm:
            # is_norm=True: adjacency is aliased straight through (no writeback).
            assert A_out is A

    print("KERNEL_OK")
</pallas_src>

<mosaic_0001>
module attributes {stable_mosaic.version = 11 : i64} {
  func.func @_gcn_kernel(%arg0: memref<2x128x64xf32, #tpu.memory_space<vmem>>, %arg1: memref<2x128x128xf32, #tpu.memory_space<vmem>>, %arg2: memref<64x128xf32, #tpu.memory_space<vmem>>, %arg3: memref<1x128xf32, #tpu.memory_space<vmem>>, %arg4: memref<1x128xf32, #tpu.memory_space<vmem>>, %arg5: memref<256x128xf32, #tpu.memory_space<vmem>>, %arg6: memref<2x128x128xf32, #tpu.memory_space<vmem>>) attributes {dimension_semantics = [], scalar_prefetch = 0 : i64, scratch_operands = 0 : i64, tpu.core_type = #tpu.core_type<tc>} {
    %c0 = arith.constant 0 : index
    %c0_0 = arith.constant 0 : index
    %c0_1 = arith.constant 0 : index
    %0 = vector.load %arg1[%c0, %c0_0, %c0_1] : memref<2x128x128xf32, #tpu.memory_space<vmem>>, vector<2x128x128xf32>
    %c0_2 = arith.constant 0 : index
    %c0_3 = arith.constant 0 : index
    %c0_4 = arith.constant 0 : index
    %1 = vector.load %arg0[%c0_2, %c0_3, %c0_4] : memref<2x128x64xf32, #tpu.memory_space<vmem>>, vector<2x128x64xf32>
    %cst = arith.constant dense<0.000000e+00> : vector<2x128xf32>
    %2 = vector.multi_reduction <add>, %0, %cst [2] : vector<2x128x128xf32> to vector<2x128xf32>
    %3 = vector.shape_cast %2 : vector<2x128xf32> to vector<2x128x1xf32>
    %cst_5 = arith.constant 1.000000e-07 : f32
    %4 = vector.broadcast %cst_5 : f32 to vector<2x128x1xf32>
    %5 = arith.addf %3, %4 : vector<2x128x1xf32>
    %6 = tpu.reciprocal %5 : vector<2x128x1xf32> -> vector<2x128x1xf32>
    %7 = vector.broadcast %6 : vector<2x128x1xf32> to vector<2x128x128xf32>
    %8 = arith.mulf %0, %7 : vector<2x128x128xf32>
    %c0_6 = arith.constant 0 : index
    %c0_7 = arith.constant 0 : index
    %c0_8 = arith.constant 0 : index
    %9 = vector.load %arg6[%c0_6, %c0_7, %c0_8] : memref<2x128x128xf32, #tpu.memory_space<vmem>>, vector<2x128x128xf32>
    tpu.vector_store %arg6[%c0_6, %c0_7, %c0_8], %8 {strides = array<i32>} : memref<2x128x128xf32, #tpu.memory_space<vmem>>, vector<2x128x128xf32>,
    "tpu.trace_start"() <{level = 10 : i32, message = "bnm,bmf->bnf"}> : () -> ()
    %cst_9 = arith.constant dense<0.000000e+00> : vector<2x128x64xf32>
    %10 = tpu.matmul %8, %1, %cst_9 {dimension_numbers = #tpu.dot_dimension_numbers<[2], [1], [1], [2], [0, 0, 0, 1, 1, 2], [0], [0]>} : vector<2x128x128xf32>, vector<2x128x64xf32>, vector<2x128x64xf32> -> vector<2x128x64xf32>
    "tpu.trace_stop"() : () -> ()
    %11 = vector.shape_cast %10 : vector<2x128x64xf32> to vector<256x64xf32>
    %c0_10 = arith.constant 0 : index
    %c0_11 = arith.constant 0 : index
    %12 = vector.load %arg2[%c0_10, %c0_11] : memref<64x128xf32, #tpu.memory_space<vmem>>, vector<64x128xf32>
    %cst_12 = arith.constant dense<0.000000e+00> : vector<256x128xf32>
    %13 = tpu.matmul %11, %12, %cst_12 {dimension_numbers = #tpu.dot_dimension_numbers<[1], [0], [0], [1], [0, 0, 1, 1], [], []>} : vector<256x64xf32>, vector<64x128xf32>, vector<256x128xf32> -> vector<256x128xf32>
    %cst_13 = arith.constant dense<0.000000e+00> : vector<128xf32>
    %14 = vector.multi_reduction <add>, %13, %cst_13 [0] : vector<256x128xf32> to vector<128xf32>
    %15 = vector.shape_cast %14 : vector<128xf32> to vector<1x128xf32>
    %16 = arith.mulf %13, %13 : vector<256x128xf32>
    %cst_14 = arith.constant dense<0.000000e+00> : vector<128xf32>
    %17 = vector.multi_reduction <add>, %16, %cst_14 [0] : vector<256x128xf32> to vector<128xf32>
    %18 = vector.shape_cast %17 : vector<128xf32> to vector<1x128xf32>
    %cst_15 = arith.constant 3.906250e-03 : f32
    %19 = vector.broadcast %cst_15 : f32 to vector<1x128xf32>
    %20 = arith.mulf %15, %19 : vector<1x128xf32>
    %cst_16 = arith.constant 3.906250e-03 : f32
    %21 = vector.broadcast %cst_16 : f32 to vector<1x128xf32>
    %22 = arith.mulf %18, %21 : vector<1x128xf32>
    %23 = arith.mulf %20, %20 : vector<1x128xf32>
    %24 = arith.subf %22, %23 : vector<1x128xf32>
    %c0_17 = arith.constant 0 : index
    %c0_18 = arith.constant 0 : index
    %25 = vector.load %arg3[%c0_17, %c0_18] : memref<1x128xf32, #tpu.memory_space<vmem>>, vector<1x128xf32>
    %cst_19 = arith.constant 9.99999974E-6 : f32
    %26 = vector.broadcast %cst_19 : f32 to vector<1x128xf32>
    %27 = arith.addf %24, %26 : vector<1x128xf32>
    %28 = math.rsqrt %27 : vector<1x128xf32>
    %29 = arith.mulf %25, %28 : vector<1x128xf32>
    %c0_20 = arith.constant 0 : index
    %c0_21 = arith.constant 0 : index
    %30 = vector.load %arg4[%c0_20, %c0_21] : memref<1x128xf32, #tpu.memory_space<vmem>>, vector<1x128xf32>
    %31 = arith.mulf %20, %29 : vector<1x128xf32>
    %32 = arith.subf %30, %31 : vector<1x128xf32>
    %33 = vector.broadcast %29 : vector<1x128xf32> to vector<256x128xf32>
    %34 = arith.mulf %13, %33 : vector<256x128xf32>
    %35 = vector.broadcast %32 : vector<1x128xf32> to vector<256x128xf32>
    %36 = arith.addf %34, %35 : vector<256x128xf32>
    %c0_22 = arith.constant 0 : index
    %c0_23 = arith.constant 0 : index
    %37 = vector.load %arg5[%c0_22, %c0_23] : memref<256x128xf32, #tpu.memory_space<vmem>>, vector<256x128xf32>
    tpu.vector_store %arg5[%c0_22, %c0_23], %36 {strides = array<i32>} : memref<256x128xf32, #tpu.memory_space<vmem>>, vector<256x128xf32>,
    return
  }
}

</mosaic_0001>

<llo_original>
// kernel: tpu_custom_call.1
$region0: #{tpu_custom_call.1}
  #allocation0 [shape = 'u32[]', space=smem, size = 0x4, offset = 0x4, fixed_abs, tag = 'smem constant byte address 0x4 - core index']
  #allocation1 [shape = 'u32[72,128]{1,0:T(1,128)}', space=vmem, size = 0x9000, scoped, tag = 'internal scratch']
  %s0 = inlined_call_operand.vmem [shape: f32[2,128,64], index: 0, kind: input, shape index: {}]
  %s1 = inlined_call_operand.vmem [shape: f32[2,128,128], index: 1, kind: input, shape index: {}]
  %s2 = inlined_call_operand.vmem [shape: f32[64,128], index: 2, kind: input, shape index: {}]
  %s3 = inlined_call_operand.vmem [shape: f32[1,128], index: 3, kind: input, shape index: {}]
  %s4 = inlined_call_operand.vmem [shape: f32[1,128], index: 4, kind: input, shape index: {}]
  %s5 = inlined_call_operand.hbm [shape: f32[256,128], index: 5, kind: output, shape index: {0}]
  %s6 = inlined_call_operand.hbm [shape: f32[2,128,128], index: 6, kind: output, shape index: {1}]
  %7 = xla_tuple %s5, %s6
  %s8 = sld [smem:[#allocation0]]
  $region38: #{tpu_custom_call.1} parent=0
    _
  %s10 = ssub.s32 1, %s8
  %s11 = scalar_select 0, %s10, %s8
  $region1: #{tpu_custom_call.1} parent=0
    #allocation2 [shape = 'u8[131072]{0}', space=vmem, size = 0x20000, scoped, tag = 'output window, operand 0, single buffered']
    #allocation3 [shape = 's32[1]{0}', space=sflag, size = 0x4, scoped, tag = 'scoped memory for tpu_custom_call.1']
    #allocation4 [shape = 'u8[131072]{0}', space=vmem, size = 0x20000, scoped, tag = 'output window, operand 1, single buffered']
    #allocation5 [shape = 's32[1]{0}', space=sflag, size = 0x4, scoped, tag = 'scoped memory for tpu_custom_call.1']
    %12 = vsyncpa [#allocation3], 0
    %13 = vsyncpa [#allocation5], 0
    // Predicated region
    $region2: #{tpu_custom_call.1} parent=1 // pred_check
      _
    $region3: #{tpu_custom_call.1} parent=1 // pred_check_branch
      %15 = sbr.rel (0) target = $region5
    $region4: #{tpu_custom_call.1} parent=1 // pred_region
      _
    $region5: #{tpu_custom_call.1} parent=1 // pred_fallthru
      _
    // Predicated region
    $region6: #{tpu_custom_call.1} parent=1 // pred_check
      _
    $region7: #{tpu_custom_call.1} parent=1 // pred_check_branch
      %17 = sbr.rel (0) target = $region9
    $region8: #{tpu_custom_call.1} parent=1 // pred_region
      _
    $region9: #{tpu_custom_call.1} parent=1 // pred_fallthru
      _
    // Predicated region
    $region10: #{tpu_custom_call.1} parent=1 // pred_check
      _
    $region11: #{tpu_custom_call.1} parent=1 // pred_check_branch
      %19 = sbr.rel (0) target = $region13
    $region12: #{tpu_custom_call.1} parent=1 // pred_region
      _
    $region13: #{tpu_custom_call.1} parent=1 // pred_fallthru
      _
    // Predicated region
    $region14: #{tpu_custom_call.1} parent=1 // pred_check
      _
    $region15: #{tpu_custom_call.1} parent=1 // pred_check_branch
      %21 = sbr.rel (0) target = $region17
    $region16: #{tpu_custom_call.1} parent=1 // pred_region
      _
    $region17: #{tpu_custom_call.1} parent=1 // pred_fallthru
      _
    // Predicated region
    $region18: #{tpu_custom_call.1} parent=1 // pred_check
      _
    $region19: #{tpu_custom_call.1} parent=1 // pred_check_branch
      %23 = sbr.rel (0) target = $region21
    $region20: #{tpu_custom_call.1} parent=1 // pred_region
      _
    $region21: #{tpu_custom_call.1} parent=1 // pred_fallthru
      _
    %v24 = vld [vmem:[%s1] sm:$0xff]
    %v25 = vld [vmem:[%s1 + $0x8] sm:$0xff]
    %v26 = vld [vmem:[%s1 + $0x10] sm:$0xff]
    %v27 = vld [vmem:[%s1 + $0x18] sm:$0xff]
    %v28 = vld [vmem:[%s1 + $0x20] sm:$0xff]
    %v29 = vld [vmem:[%s1 + $0x28] sm:$0xff]
    %v30 = vld [vmem:[%s1 + $0x30] sm:$0xff]
    %v31 = vld [vmem:[%s1 + $0x38] sm:$0xff]
    %v32 = vld [vmem:[%s1 + $0x40] sm:$0xff]
    %v33 = vld [vmem:[%s1 + $0x48] sm:$0xff]
    %v34 = vld [vmem:[%s1 + $0x50] sm:$0xff]
    %v35 = vld [vmem:[%s1 + $0x58] sm:$0xff]
    %v36 = vld [vmem:[%s1 + $0x60] sm:$0xff]
    %v37 = vld [vmem:[%s1 + $0x68] sm:$0xff]
    %v38 = vld [vmem:[%s1 + $0x70] sm:$0xff]
    %v39 = vld [vmem:[%s1 + $0x78] sm:$0xff]
    %v40 = vld [vmem:[%s1 + $0x80] sm:$0xff]
    %v41 = vld [vmem:[%s1 + $0x88] sm:$0xff]
    %v42 = vld [vmem:[%s1 + $0x90] sm:$0xff]
    %v43 = vld [vmem:[%s1 + $0x98] sm:$0xff]
    %v44 = vld [vmem:[%s1 + $0xa0] sm:$0xff]
    %v45 = vld [vmem:[%s1 + $0xa8] sm:$0xff]
    %v46 = vld [vmem:[%s1 + $0xb0] sm:$0xff]
    %v47 = vld [vmem:[%s1 + $0xb8] sm:$0xff]
    %v48 = vld [vmem:[%s1 + $0xc0] sm:$0xff]
    %v49 = vld [vmem:[%s1 + $0xc8] sm:$0xff]
    %v50 = vld [vmem:[%s1 + $0xd0] sm:$0xff]
    %v51 = vld [vmem:[%s1 + $0xd8] sm:$0xff]
    %v52 = vld [vmem:[%s1 + $0xe0] sm:$0xff]
    %v53 = vld [vmem:[%s1 + $0xe8] sm:$0xff]
    %v54 = vld [vmem:[%s1 + $0xf0] sm:$0xff]
    %v55 = vld [vmem:[%s1 + $0xf8] sm:$0xff]
    %v56 = vld [vmem:[%s0] sm:$0xff]
    %v57 = vld [vmem:[%s0 + $0x8] sm:$0xff]
    %v58 = vld [vmem:[%s0 + $0x10] sm:$0xff]
    %v59 = vld [vmem:[%s0 + $0x18] sm:$0xff]
    %v60 = vld [vmem:[%s0 + $0x20] sm:$0xff]
    %v61 = vld [vmem:[%s0 + $0x28] sm:$0xff]
    %v62 = vld [vmem:[%s0 + $0x30] sm:$0xff]
    %v63 = vld [vmem:[%s0 + $0x38] sm:$0xff]
    %v64 = vld [vmem:[%s0 + $0x40] sm:$0xff]
    %v65 = vld [vmem:[%s0 + $0x48] sm:$0xff]
    %v66 = vld [vmem:[%s0 + $0x50] sm:$0xff]
    %v67 = vld [vmem:[%s0 + $0x58] sm:$0xff]
    %v68 = vld [vmem:[%s0 + $0x60] sm:$0xff]
    %v69 = vld [vmem:[%s0 + $0x68] sm:$0xff]
    %v70 = vld [vmem:[%s0 + $0x70] sm:$0xff]
    %v71 = vld [vmem:[%s0 + $0x78] sm:$0xff]
    %v72 = vld [vmem:[%s0 + $0x80] sm:$0xff]
    %v73 = vld [vmem:[%s0 + $0x88] sm:$0xff]
    %v74 = vld [vmem:[%s0 + $0x90] sm:$0xff]
    %v75 = vld [vmem:[%s0 + $0x98] sm:$0xff]
    %v76 = vld [vmem:[%s0 + $0xa0] sm:$0xff]
    %v77 = vld [vmem:[%s0 + $0xa8] sm:$0xff]
    %v78 = vld [vmem:[%s0 + $0xb0] sm:$0xff]
    %v79 = vld [vmem:[%s0 + $0xb8] sm:$0xff]
    %v80 = vld [vmem:[%s0 + $0xc0] sm:$0xff]
    %v81 = vld [vmem:[%s0 + $0xc8] sm:$0xff]
    %v82 = vld [vmem:[%s0 + $0xd0] sm:$0xff]
    %v83 = vld [vmem:[%s0 + $0xd8] sm:$0xff]
    %v84 = vld [vmem:[%s0 + $0xe0] sm:$0xff]
    %v85 = vld [vmem:[%s0 + $0xe8] sm:$0xff]
    %v86 = vld [vmem:[%s0 + $0xf0] sm:$0xff]
    %v87 = vld [vmem:[%s0 + $0xf8] sm:$0xff]
    %88 = vadd.xlane.f32.xlu0 %v24
    %v89 = vpop.xlane.xlu0 %88
    %90 = vadd.xlane.f32.xlu0 %v25
    %v91 = vpop.xlane.xlu0 %90
    %92 = vadd.xlane.f32.xlu0 %v26
    %v93 = vpop.xlane.xlu0 %92
    %94 = vadd.xlane.f32.xlu0 %v27
    %v95 = vpop.xlane.xlu0 %94
    %96 = vadd.xlane.f32.xlu0 %v28
    %v97 = vpop.xlane.xlu0 %96
    %98 = vadd.xlane.f32.xlu0 %v29
    %v99 = vpop.xlane.xlu0 %98
    %100 = vadd.xlane.f32.xlu0 %v30
    %v101 = vpop.xlane.xlu0 %100
    %102 = vadd.xlane.f32.xlu0 %v31
    %v103 = vpop.xlane.xlu0 %102
    %104 = vadd.xlane.f32.xlu0 %v32
    %v105 = vpop.xlane.xlu0 %104
    %106 = vadd.xlane.f32.xlu0 %v33
    %v107 = vpop.xlane.xlu0 %106
    %108 = vadd.xlane.f32.xlu0 %v34
    %v109 = vpop.xlane.xlu0 %108
    %110 = vadd.xlane.f32.xlu0 %v35
    %v111 = vpop.xlane.xlu0 %110
    %112 = vadd.xlane.f32.xlu0 %v36
    %v113 = vpop.xlane.xlu0 %112
    %114 = vadd.xlane.f32.xlu0 %v37
    %v115 = vpop.xlane.xlu0 %114
    %116 = vadd.xlane.f32.xlu0 %v38
    %v117 = vpop.xlane.xlu0 %116
    %118 = vadd.xlane.f32.xlu0 %v39
    %v119 = vpop.xlane.xlu0 %118
    %120 = vadd.xlane.f32.xlu0 %v40
    %v121 = vpop.xlane.xlu0 %120
    %122 = vadd.xlane.f32.xlu0 %v41
    %v123 = vpop.xlane.xlu0 %122
    %124 = vadd.xlane.f32.xlu0 %v42
    %v125 = vpop.xlane.xlu0 %124
    %126 = vadd.xlane.f32.xlu0 %v43
    %v127 = vpop.xlane.xlu0 %126
    %128 = vadd.xlane.f32.xlu0 %v44
    %v129 = vpop.xlane.xlu0 %128
    %130 = vadd.xlane.f32.xlu0 %v45
    %v131 = vpop.xlane.xlu0 %130
    %132 = vadd.xlane.f32.xlu0 %v46
    %v133 = vpop.xlane.xlu0 %132
    %134 = vadd.xlane.f32.xlu0 %v47
    %v135 = vpop.xlane.xlu0 %134
    %136 = vadd.xlane.f32.xlu0 %v48
    %v137 = vpop.xlane.xlu0 %136
    %138 = vadd.xlane.f32.xlu0 %v49
    %v139 = vpop.xlane.xlu0 %138
    %140 = vadd.xlane.f32.xlu0 %v50
    %v141 = vpop.xlane.xlu0 %140
    %142 = vadd.xlane.f32.xlu0 %v51
    %v143 = vpop.xlane.xlu0 %142
    %144 = vadd.xlane.f32.xlu0 %v52
    %v145 = vpop.xlane.xlu0 %144
    %146 = vadd.xlane.f32.xlu0 %v53
    %v147 = vpop.xlane.xlu0 %146
    %148 = vadd.xlane.f32.xlu0 %v54
    %v149 = vpop.xlane.xlu0 %148
    %150 = vadd.xlane.f32.xlu0 %v55
    %v151 = vpop.xlane.xlu0 %150
    %v152 = vadd.f32 %v89, 1e-07
    %v153 = vadd.f32 %v91, 1e-07
    %v154 = vadd.f32 %v93, 1e-07
    %v155 = vadd.f32 %v95, 1e-07
    %v156 = vadd.f32 %v97, 1e-07
    %v157 = vadd.f32 %v99, 1e-07
    %v158 = vadd.f32 %v101, 1e-07
    %v159 = vadd.f32 %v103, 1e-07
    %v160 = vadd.f32 %v105, 1e-07
    %v161 = vadd.f32 %v107, 1e-07
    %v162 = vadd.f32 %v109, 1e-07
    %v163 = vadd.f32 %v111, 1e-07
    %v164 = vadd.f32 %v113, 1e-07
    %v165 = vadd.f32 %v115, 1e-07
    %v166 = vadd.f32 %v117, 1e-07
    %v167 = vadd.f32 %v119, 1e-07
    %v168 = vadd.f32 %v121, 1e-07
    %v169 = vadd.f32 %v123, 1e-07
    %v170 = vadd.f32 %v125, 1e-07
    %v171 = vadd.f32 %v127, 1e-07
    %v172 = vadd.f32 %v129, 1e-07
    %v173 = vadd.f32 %v131, 1e-07
    %v174 = vadd.f32 %v133, 1e-07
    %v175 = vadd.f32 %v135, 1e-07
    %v176 = vadd.f32 %v137, 1e-07
    %v177 = vadd.f32 %v139, 1e-07
    %v178 = vadd.f32 %v141, 1e-07
    %v179 = vadd.f32 %v143, 1e-07
    %v180 = vadd.f32 %v145, 1e-07
    %v181 = vadd.f32 %v147, 1e-07
    %v182 = vadd.f32 %v149, 1e-07
    %v183 = vadd.f32 %v151, 1e-07
    %v184 = vrcp.pop %v152
    %v185 = vmul.f32 %v152, %v184
    %v186 = vsub.f32 1.0, %v185
    %v187 = vmul.f32 %v184, %v186
    %v188 = vadd.f32 %v184, %v187
    %vm189 = vweird.f32 %v152
    %vm190 = vweird.f32 %v184
    %vm191 = vmor %vm189, %vm190
    %v192 = vsel %vm191, %v184, %v188
    %v193 = vand.u32 2147483647, %v152
    %vm194 = vcmp.eq.f32.partialorder %v193, 8.507059e+37
    %v195 = vand.u32 %v152, 2147483648
    %v196 = vor.u32 1.1754944e-38, %v195
    %v197 = vsel %vm194, %v196, %v192
    %v198 = vrcp.pop %v153
    %v199 = vmul.f32 %v153, %v198
    %v200 = vsub.f32 1.0, %v199
    %v201 = vmul.f32 %v198, %v200
    %v202 = vadd.f32 %v198, %v201
    %vm203 = vweird.f32 %v153
    %vm204 = vweird.f32 %v198
    %vm205 = vmor %vm203, %vm204
    %v206 = vsel %vm205, %v198, %v202
    %v207 = vand.u32 2147483647, %v153
    %vm208 = vcmp.eq.f32.partialorder %v207, 8.507059e+37
    %v209 = vand.u32 %v153, 2147483648
    %v210 = vor.u32 1.1754944e-38, %v209
    %v211 = vsel %vm208, %v210, %v206
    %v212 = vrcp.pop %v154
    %v213 = vmul.f32 %v154, %v212
    %v214 = vsub.f32 1.0, %v213
    %v215 = vmul.f32 %v212, %v214
    %v216 = vadd.f32 %v212, %v215
    %vm217 = vweird.f32 %v154
    %vm218 = vweird.f32 %v212
    %vm219 = vmor %vm217, %vm218
    %v220 = vsel %vm219, %v212, %v216
    %v221 = vand.u32 2147483647, %v154
    %vm222 = vcmp.eq.f32.partialorder %v221, 8.507059e+37
    %v223 = vand.u32 %v154, 2147483648
    %v224 = vor.u32 1.1754944e-38, %v223
    %v225 = vsel %vm222, %v224, %v220
    %v226 = vrcp.pop %v155
    %v227 = vmul.f32 %v155, %v226
    %v228 = vsub.f32 1.0, %v227
    %v229 = vmul.f32 %v226, %v228
    %v230 = vadd.f32 %v226, %v229
    %vm231 = vweird.f32 %v155
    %vm232 = vweird.f32 %v226
    %vm233 = vmor %vm231, %vm232
    %v234 = vsel %vm233, %v226, %v230
    %v235 = vand.u32 2147483647, %v155
    %vm236 = vcmp.eq.f32.partialorder %v235, 8.507059e+37
    %v237 = vand.u32 %v155, 2147483648
    %v238 = vor.u32 1.1754944e-38, %v237
    %v239 = vsel %vm236, %v238, %v234
    %v240 = vrcp.pop %v156
    %v241 = vmul.f32 %v156, %v240
    %v242 = vsub.f32 1.0, %v241
    %v243 = vmul.f32 %v240, %v242
    %v244 = vadd.f32 %v240, %v243
    %vm245 = vweird.f32 %v156
    %vm246 = vweird.f32 %v240
    %vm247 = vmor %vm245, %vm246
    %v248 = vsel %vm247, %v240, %v244
    %v249 = vand.u32 2147483647, %v156
    %vm250 = vcmp.eq.f32.partialorder %v249, 8.507059e+37
    %v251 = vand.u32 %v156, 2147483648
    %v252 = vor.u32 1.1754944e-38, %v251
    %v253 = vsel %vm250, %v252, %v248
    %v254 = vrcp.pop %v157
    %v255 = vmul.f32 %v157, %v254
    %v256 = vsub.f32 1.0, %v255
    %v257 = vmul.f32 %v254, %v256
    %v258 = vadd.f32 %v254, %v257
    %vm259 = vweird.f32 %v157
    %vm260 = vweird.f32 %v254
    %vm261 = vmor %vm259, %vm260
    %v262 = vsel %vm261, %v254, %v258
    %v263 = vand.u32 2147483647, %v157
    %vm264 = vcmp.eq.f32.partialorder %v263, 8.507059e+37
    %v265 = vand.u32 %v157, 2147483648
    %v266 = vor.u32 1.1754944e-38, %v265
    %v267 = vsel %vm264, %v266, %v262
    %v268 = vrcp.pop %v158
    %v269 = vmul.f32 %v158, %v268
    %v270 = vsub.f32 1.0, %v269
    %v271 = vmul.f32 %v268, %v270
    %v272 = vadd.f32 %v268, %v271
    %vm273 = vweird.f32 %v158
    %vm274 = vweird.f32 %v268
    %vm275 = vmor %vm273, %vm274
    %v276 = vsel %vm275, %v268, %v272
    %v277 = vand.u32 2147483647, %v158
    %vm278 = vcmp.eq.f32.partialorder %v277, 8.507059e+37
    %v279 = vand.u32 %v158, 2147483648
    %v280 = vor.u32 1.1754944e-38, %v279
    %v281 = vsel %vm278, %v280, %v276
    %v282 = vrcp.pop %v159
    %v283 = vmul.f32 %v159, %v282
    %v284 = vsub.f32 1.0, %v283
    %v285 = vmul.f32 %v282, %v284
    %v286 = vadd.f32 %v282, %v285
    %vm287 = vweird.f32 %v159
    %vm288 = vweird.f32 %v282
    %vm289 = vmor %vm287, %vm288
    %v290 = vsel %vm289, %v282, %v286
    %v291 = vand.u32 2147483647, %v159
    %vm292 = vcmp.eq.f32.partialorder %v291, 8.507059e+37
    %v293 = vand.u32 %v159, 2147483648
    %v294 = vor.u32 1.1754944e-38, %v293
    %v295 = vsel %vm292, %v294, %v290
    %v296 = vrcp.pop %v160
    %v297 = vmul.f32 %v160, %v296
    %v298 = vsub.f32 1.0, %v297
    %v299 = vmul.f32 %v296, %v298
    %v300 = vadd.f32 %v296, %v299
    %vm301 = vweird.f32 %v160
    %vm302 = vweird.f32 %v296
    %vm303 = vmor %vm301, %vm302
    %v304 = vsel %vm303, %v296, %v300
    %v305 = vand.u32 2147483647, %v160
    %vm306 = vcmp.eq.f32.partialorder %v305, 8.507059e+37
    %v307 = vand.u32 %v160, 2147483648
    %v308 = vor.u32 1.1754944e-38, %v307
    %v309 = vsel %vm306, %v308, %v304
    %v310 = vrcp.pop %v161
    %v311 = vmul.f32 %v161, %v310
    %v312 = vsub.f32 1.0, %v311
    %v313 = vmul.f32 %v310, %v312
    %v314 = vadd.f32 %v310, %v313
    %vm315 = vweird.f32 %v161
    %vm316 = vweird.f32 %v310
    %vm317 = vmor %vm315, %vm316
    %v318 = vsel %vm317, %v310, %v314
    %v319 = vand.u32 2147483647, %v161
    %vm320 = vcmp.eq.f32.partialorder %v319, 8.507059e+37
    %v321 = vand.u32 %v161, 2147483648
    %v322 = vor.u32 1.1754944e-38, %v321
    %v323 = vsel %vm320, %v322, %v318
    %v324 = vrcp.pop %v162
    %v325 = vmul.f32 %v162, %v324
    %v326 = vsub.f32 1.0, %v325
    %v327 = vmul.f32 %v324, %v326
    %v328 = vadd.f32 %v324, %v327
    %vm329 = vweird.f32 %v162
    %vm330 = vweird.f32 %v324
    %vm331 = vmor %vm329, %vm330
    %v332 = vsel %vm331, %v324, %v328
    %v333 = vand.u32 2147483647, %v162
    %vm334 = vcmp.eq.f32.partialorder %v333, 8.507059e+37
    %v335 = vand.u32 %v162, 2147483648
    %v336 = vor.u32 1.1754944e-38, %v335
    %v337 = vsel %vm334, %v336, %v332
    %v338 = vrcp.pop %v163
    %v339 = vmul.f32 %v163, %v338
    %v340 = vsub.f32 1.0, %v339
    %v341 = vmul.f32 %v338, %v340
    %v342 = vadd.f32 %v338, %v341
    %vm343 = vweird.f32 %v163
    %vm344 = vweird.f32 %v338
    %vm345 = vmor %vm343, %vm344
    %v346 = vsel %vm345, %v338, %v342
    %v347 = vand.u32 2147483647, %v163
    %vm348 = vcmp.eq.f32.partialorder %v347, 8.507059e+37
    %v349 = vand.u32 %v163, 2147483648
    %v350 = vor.u32 1.1754944e-38, %v349
    %v351 = vsel %vm348, %v350, %v346
    %v352 = vrcp.pop %v164
    %v353 = vmul.f32 %v164, %v352
    %v354 = vsub.f32 1.0, %v353
    %v355 = vmul.f32 %v352, %v354
    %v356 = vadd.f32 %v352, %v355
    %vm357 = vweird.f32 %v164
    %vm358 = vweird.f32 %v352
    %vm359 = vmor %vm357, %vm358
    %v360 = vsel %vm359, %v352, %v356
    %v361 = vand.u32 2147483647, %v164
    %vm362 = vcmp.eq.f32.partialorder %v361, 8.507059e+37
    %v363 = vand.u32 %v164, 2147483648
    %v364 = vor.u32 1.1754944e-38, %v363
    %v365 = vsel %vm362, %v364, %v360
    %v366 = vrcp.pop %v165
    %v367 = vmul.f32 %v165, %v366
    %v368 = vsub.f32 1.0, %v367
    %v369 = vmul.f32 %v366, %v368
    %v370 = vadd.f32 %v366, %v369
    %vm371 = vweird.f32 %v165
    %vm372 = vweird.f32 %v366
    %vm373 = vmor %vm371, %vm372
    %v374 = vsel %vm373, %v366, %v370
    %v375 = vand.u32 2147483647, %v165
    %vm376 = vcmp.eq.f32.partialorder %v375, 8.507059e+37
    %v377 = vand.u32 %v165, 2147483648
    %v378 = vor.u32 1.1754944e-38, %v377
    %v379 = vsel %vm376, %v378, %v374
    %v380 = vrcp.pop %v166
    %v381 = vmul.f32 %v166, %v380
    %v382 = vsub.f32 1.0, %v381
    %v383 = vmul.f32 %v380, %v382
    %v384 = vadd.f32 %v380, %v383
    %vm385 = vweird.f32 %v166
    %vm386 = vweird.f32 %v380
    %vm387 = vmor %vm385, %vm386
    %v388 = vsel %vm387, %v380, %v384
    %v389 = vand.u32 2147483647, %v166
    %vm390 = vcmp.eq.f32.partialorder %v389, 8.507059e+37
    %v391 = vand.u32 %v166, 2147483648
    %v392 = vor.u32 1.1754944e-38, %v391
    %v393 = vsel %vm390, %v392, %v388
    %v394 = vrcp.pop %v167
    %v395 = vmul.f32 %v167, %v394
    %v396 = vsub.f32 1.0, %v395
    %v397 = vmul.f32 %v394, %v396
    %v398 = vadd.f32 %v394, %v397
    %vm399 = vweird.f32 %v167
    %vm400 = vweird.f32 %v394
    %vm401 = vmor %vm399, %vm400
    %v402 = vsel %vm401, %v394, %v398
    %v403 = vand.u32 2147483647, %v167
    %vm404 = vcmp.eq.f32.partialorder %v403, 8.507059e+37
    %v405 = vand.u32 %v167, 2147483648
    %v406 = vor.u32 1.1754944e-38, %v405
    %v407 = vsel %vm404, %v406, %v402
    %v408 = vrcp.pop %v168
    %v409 = vmul.f32 %v168, %v408
    %v410 = vsub.f32 1.0, %v409
    %v411 = vmul.f32 %v408, %v410
    %v412 = vadd.f32 %v408, %v411
    %vm413 = vweird.f32 %v168
    %vm414 = vweird.f32 %v408
    %vm415 = vmor %vm413, %vm414
    %v416 = vsel %vm415, %v408, %v412
    %v417 = vand.u32 2147483647, %v168
    %vm418 = vcmp.eq.f32.partialorder %v417, 8.507059e+37
    %v419 = vand.u32 %v168, 2147483648
    %v420 = vor.u32 1.1754944e-38, %v419
    %v421 = vsel %vm418, %v420, %v416
    %v422 = vrcp.pop %v169
    %v423 = vmul.f32 %v169, %v422
    %v424 = vsub.f32 1.0, %v423
    %v425 = vmul.f32 %v422, %v424
    %v426 = vadd.f32 %v422, %v425
    %vm427 = vweird.f32 %v169
    %vm428 = vweird.f32 %v422
    %vm429 = vmor %vm427, %vm428
    %v430 = vsel %vm429, %v422, %v426
    %v431 = vand.u32 2147483647, %v169
    %vm432 = vcmp.eq.f32.partialorder %v431, 8.507059e+37
    %v433 = vand.u32 %v169, 2147483648
    %v434 = vor.u32 1.1754944e-38, %v433
    %v435 = vsel %vm432, %v434, %v430
    %v436 = vrcp.pop %v170
    %v437 = vmul.f32 %v170, %v436
    %v438 = vsub.f32 1.0, %v437
    %v439 = vmul.f32 %v436, %v438
    %v440 = vadd.f32 %v436, %v439
    %vm441 = vweird.f32 %v170
    %vm442 = vweird.f32 %v436
    %vm443 = vmor %vm441, %vm442
    %v444 = vsel %vm443, %v436, %v440
    %v445 = vand.u32 2147483647, %v170
    %vm446 = vcmp.eq.f32.partialorder %v445, 8.507059e+37
    %v447 = vand.u32 %v170, 2147483648
    %v448 = vor.u32 1.1754944e-38, %v447
    %v449 = vsel %vm446, %v448, %v444
    %v450 = vrcp.pop %v171
    %v451 = vmul.f32 %v171, %v450
    %v452 = vsub.f32 1.0, %v451
    %v453 = vmul.f32 %v450, %v452
    %v454 = vadd.f32 %v450, %v453
    %vm455 = vweird.f32 %v171
    %vm456 = vweird.f32 %v450
    %vm457 = vmor %vm455, %vm456
    %v458 = vsel %vm457, %v450, %v454
    %v459 = vand.u32 2147483647, %v171
    %vm460 = vcmp.eq.f32.partialorder %v459, 8.507059e+37
    %v461 = vand.u32 %v171, 2147483648
    %v462 = vor.u32 1.1754944e-38, %v461
    %v463 = vsel %vm460, %v462, %v458
    %v464 = vrcp.pop %v172
    %v465 = vmul.f32 %v172, %v464
    %v466 = vsub.f32 1.0, %v465
    %v467 = vmul.f32 %v464, %v466
    %v468 = vadd.f32 %v464, %v467
    %vm469 = vweird.f32 %v172
    %vm470 = vweird.f32 %v464
    %vm471 = vmor %vm469, %vm470
    %v472 = vsel %vm471, %v464, %v468
    %v473 = vand.u32 2147483647, %v172
    %vm474 = vcmp.eq.f32.partialorder %v473, 8.507059e+37
    %v475 = vand.u32 %v172, 2147483648
    %v476 = vor.u32 1.1754944e-38, %v475
    %v477 = vsel %vm474, %v476, %v472
    %v478 = vrcp.pop %v173
    %v479 = vmul.f32 %v173, %v478
    %v480 = vsub.f32 1.0, %v479
    %v481 = vmul.f32 %v478, %v480
    %v482 = vadd.f32 %v478, %v481
    %vm483 = vweird.f32 %v173
    %vm484 = vweird.f32 %v478
    %vm485 = vmor %vm483, %vm484
    %v486 = vsel %vm485, %v478, %v482
    %v487 = vand.u32 2147483647, %v173
    %vm488 = vcmp.eq.f32.partialorder %v487, 8.507059e+37
    %v489 = vand.u32 %v173, 2147483648
    %v490 = vor.u32 1.1754944e-38, %v489
    %v491 = vsel %vm488, %v490, %v486
    %v492 = vrcp.pop %v174
    %v493 = vmul.f32 %v174, %v492
    %v494 = vsub.f32 1.0, %v493
    %v495 = vmul.f32 %v492, %v494
    %v496 = vadd.f32 %v492, %v495
    %vm497 = vweird.f32 %v174
    %vm498 = vweird.f32 %v492
    %vm499 = vmor %vm497, %vm498
    %v500 = vsel %vm499, %v492, %v496
    %v501 = vand.u32 2147483647, %v174
    %vm502 = vcmp.eq.f32.partialorder %v501, 8.507059e+37
    %v503 = vand.u32 %v174, 2147483648
    %v504 = vor.u32 1.1754944e-38, %v503
    %v505 = vsel %vm502, %v504, %v500
    %v506 = vrcp.pop %v175
    %v507 = vmul.f32 %v175, %v506
    %v508 = vsub.f32 1.0, %v507
    %v509 = vmul.f32 %v506, %v508
    %v510 = vadd.f32 %v506, %v509
    %vm511 = vweird.f32 %v175
    %vm512 = vweird.f32 %v506
    %vm513 = vmor %vm511, %vm512
    %v514 = vsel %vm513, %v506, %v510
    %v515 = vand.u32 2147483647, %v175
    %vm516 = vcmp.eq.f32.partialorder %v515, 8.507059e+37
    %v517 = vand.u32 %v175, 2147483648
    %v518 = vor.u32 1.1754944e-38, %v517
    %v519 = vsel %vm516, %v518, %v514
    %v520 = vrcp.pop %v176
    %v521 = vmul.f32 %v176, %v520
    %v522 = vsub.f32 1.0, %v521
    %v523 = vmul.f32 %v520, %v522
    %v524 = vadd.f32 %v520, %v523
    %vm525 = vweird.f32 %v176
    %vm526 = vweird.f32 %v520
    %vm527 = vmor %vm525, %vm526
    %v528 = vsel %vm527, %v520, %v524
    %v529 = vand.u32 2147483647, %v176
    %vm530 = vcmp.eq.f32.partialorder %v529, 8.507059e+37
    %v531 = vand.u32 %v176, 2147483648
    %v532 = vor.u32 1.1754944e-38, %v531
    %v533 = vsel %vm530, %v532, %v528
    %v534 = vrcp.pop %v177
    %v535 = vmul.f32 %v177, %v534
    %v536 = vsub.f32 1.0, %v535
    %v537 = vmul.f32 %v534, %v536
    %v538 = vadd.f32 %v534, %v537
    %vm539 = vweird.f32 %v177
    %vm540 = vweird.f32 %v534
    %vm541 = vmor %vm539, %vm540
    %v542 = vsel %vm541, %v534, %v538
    %v543 = vand.u32 2147483647, %v177
    %vm544 = vcmp.eq.f32.partialorder %v543, 8.507059e+37
    %v545 = vand.u32 %v177, 2147483648
    %v546 = vor.u32 1.1754944e-38, %v545
    %v547 = vsel %vm544, %v546, %v542
    %v548 = vrcp.pop %v178
    %v549 = vmul.f32 %v178, %v548
    %v550 = vsub.f32 1.0, %v549
    %v551 = vmul.f32 %v548, %v550
    %v552 = vadd.f32 %v548, %v551
    %vm553 = vweird.f32 %v178
    %vm554 = vweird.f32 %v548
    %vm555 = vmor %vm553, %vm554
    %v556 = vsel %vm555, %v548, %v552
    %v557 = vand.u32 2147483647, %v178
    %vm558 = vcmp.eq.f32.partialorder %v557, 8.507059e+37
    %v559 = vand.u32 %v178, 2147483648
    %v560 = vor.u32 1.1754944e-38, %v559
    %v561 = vsel %vm558, %v560, %v556
    %v562 = vrcp.pop %v179
    %v563 = vmul.f32 %v179, %v562
    %v564 = vsub.f32 1.0, %v563
    %v565 = vmul.f32 %v562, %v564
    %v566 = vadd.f32 %v562, %v565
    %vm567 = vweird.f32 %v179
    %vm568 = vweird.f32 %v562
    %vm569 = vmor %vm567, %vm568
    %v570 = vsel %vm569, %v562, %v566
    %v571 = vand.u32 2147483647, %v179
    %vm572 = vcmp.eq.f32.partialorder %v571, 8.507059e+37
    %v573 = vand.u32 %v179, 2147483648
    %v574 = vor.u32 1.1754944e-38, %v573
    %v575 = vsel %vm572, %v574, %v570
    %v576 = vrcp.pop %v180
    %v577 = vmul.f32 %v180, %v576
    %v578 = vsub.f32 1.0, %v577
    %v579 = vmul.f32 %v576, %v578
    %v580 = vadd.f32 %v576, %v579
    %vm581 = vweird.f32 %v180
    %vm582 = vweird.f32 %v576
    %vm583 = vmor %vm581, %vm582
    %v584 = vsel %vm583, %v576, %v580
    %v585 = vand.u32 2147483647, %v180
    %vm586 = vcmp.eq.f32.partialorder %v585, 8.507059e+37
    %v587 = vand.u32 %v180, 2147483648
    %v588 = vor.u32 1.1754944e-38, %v587
    %v589 = vsel %vm586, %v588, %v584
    %v590 = vrcp.pop %v181
    %v591 = vmul.f32 %v181, %v590
    %v592 = vsub.f32 1.0, %v591
    %v593 = vmul.f32 %v590, %v592
    %v594 = vadd.f32 %v590, %v593
    %vm595 = vweird.f32 %v181
    %vm596 = vweird.f32 %v590
    %vm597 = vmor %vm595, %vm596
    %v598 = vsel %vm597, %v590, %v594
    %v599 = vand.u32 2147483647, %v181
    %vm600 = vcmp.eq.f32.partialorder %v599, 8.507059e+37
    %v601 = vand.u32 %v181, 2147483648
    %v602 = vor.u32 1.1754944e-38, %v601
    %v603 = vsel %vm600, %v602, %v598
    %v604 = vrcp.pop %v182
    %v605 = vmul.f32 %v182, %v604
    %v606 = vsub.f32 1.0, %v605
    %v607 = vmul.f32 %v604, %v606
    %v608 = vadd.f32 %v604, %v607
    %vm609 = vweird.f32 %v182
    %vm610 = vweird.f32 %v604
    %vm611 = vmor %vm609, %vm610
    %v612 = vsel %vm611, %v604, %v608
    %v613 = vand.u32 2147483647, %v182
    %vm614 = vcmp.eq.f32.partialorder %v613, 8.507059e+37
    %v615 = vand.u32 %v182, 2147483648
    %v616 = vor.u32 1.1754944e-38, %v615
    %v617 = vsel %vm614, %v616, %v612
    %v618 = vrcp.pop %v183
    %v619 = vmul.f32 %v183, %v618
    %v620 = vsub.f32 1.0, %v619
    %v621 = vmul.f32 %v618, %v620
    %v622 = vadd.f32 %v618, %v621
    %vm623 = vweird.f32 %v183
    %vm624 = vweird.f32 %v618
    %vm625 = vmor %vm623, %vm624
    %v626 = vsel %vm625, %v618, %v622
    %v627 = vand.u32 2147483647, %v183
    %vm628 = vcmp.eq.f32.partialorder %v627, 8.507059e+37
    %v629 = vand.u32 %v183, 2147483648
    %v630 = vor.u32 1.1754944e-38, %v629
    %v631 = vsel %vm628, %v630, %v626
    %v632 = vmul.f32 %v24, %v197
    %v633 = vmul.f32 %v25, %v211
    %v634 = vmul.f32 %v26, %v225
    %v635 = vmul.f32 %v27, %v239
    %v636 = vmul.f32 %v28, %v253
    %v637 = vmul.f32 %v29, %v267
    %v638 = vmul.f32 %v30, %v281
    %v639 = vmul.f32 %v31, %v295
    %v640 = vmul.f32 %v32, %v309
    %v641 = vmul.f32 %v33, %v323
    %v642 = vmul.f32 %v34, %v337
    %v643 = vmul.f32 %v35, %v351
    %v644 = vmul.f32 %v36, %v365
    %v645 = vmul.f32 %v37, %v379
    %v646 = vmul.f32 %v38, %v393
    %v647 = vmul.f32 %v39, %v407
    %v648 = vmul.f32 %v40, %v421
    %v649 = vmul.f32 %v41, %v435
    %v650 = vmul.f32 %v42, %v449
    %v651 = vmul.f32 %v43, %v463
    %v652 = vmul.f32 %v44, %v477
    %v653 = vmul.f32 %v45, %v491
    %v654 = vmul.f32 %v46, %v505
    %v655 = vmul.f32 %v47, %v519
    %v656 = vmul.f32 %v48, %v533
    %v657 = vmul.f32 %v49, %v547
    %v658 = vmul.f32 %v50, %v561
    %v659 = vmul.f32 %v51, %v575
    %v660 = vmul.f32 %v52, %v589
    %v661 = vmul.f32 %v53, %v603
    %v662 = vmul.f32 %v54, %v617
    %v663 = vmul.f32 %v55, %v631
    %664 = vst [vmem:[#allocation4] sm:$0xff] %v632
    %665 = vst [vmem:[#allocation4 + $0x8] sm:$0xff] %v633
    %666 = vst [vmem:[#allocation4 + $0x10] sm:$0xff] %v634
    %667 = vst [vmem:[#allocation4 + $0x18] sm:$0xff] %v635
    %668 = vst [vmem:[#allocation4 + $0x20] sm:$0xff] %v636
    %669 = vst [vmem:[#allocation4 + $0x28] sm:$0xff] %v637
    %670 = vst [vmem:[#allocation4 + $0x30] sm:$0xff] %v638
    %671 = vst [vmem:[#allocation4 + $0x38] sm:$0xff] %v639
    %672 = vst [vmem:[#allocation4 + $0x40] sm:$0xff] %v640
    %673 = vst [vmem:[#allocation4 + $0x48] sm:$0xff] %v641
    %674 = vst [vmem:[#allocation4 + $0x50] sm:$0xff] %v642
    %675 = vst [vmem:[#allocation4 + $0x58] sm:$0xff] %v643
    %676 = vst [vmem:[#allocation4 + $0x60] sm:$0xff] %v644
    %677 = vst [vmem:[#allocation4 + $0x68] sm:$0xff] %v645
    %678 = vst [vmem:[#allocation4 + $0x70] sm:$0xff] %v646
    %679 = vst [vmem:[#allocation4 + $0x78] sm:$0xff] %v647
    %680 = vst [vmem:[#allocation4 + $0x80] sm:$0xff] %v648
    %681 = vst [vmem:[#allocation4 + $0x88] sm:$0xff] %v649
    %682 = vst [vmem:[#allocation4 + $0x90] sm:$0xff] %v650
    %683 = vst [vmem:[#allocation4 + $0x98] sm:$0xff] %v651
    %684 = vst [vmem:[#allocation4 + $0xa0] sm:$0xff] %v652
    %685 = vst [vmem:[#allocation4 + $0xa8] sm:$0xff] %v653
    %686 = vst [vmem:[#allocation4 + $0xb0] sm:$0xff] %v654
    %687 = vst [vmem:[#allocation4 + $0xb8] sm:$0xff] %v655
    %688 = vst [vmem:[#allocation4 + $0xc0] sm:$0xff] %v656
    %689 = vst [vmem:[#allocation4 + $0xc8] sm:$0xff] %v657
    %690 = vst [vmem:[#allocation4 + $0xd0] sm:$0xff] %v658
    %691 = vst [vmem:[#allocation4 + $0xd8] sm:$0xff] %v659
    %692 = vst [vmem:[#allocation4 + $0xe0] sm:$0xff] %v660
    %693 = vst [vmem:[#allocation4 + $0xe8] sm:$0xff] %v661
    %694 = vst [vmem:[#allocation4 + $0xf0] sm:$0xff] %v662
    %695 = vst [vmem:[#allocation4 + $0xf8] sm:$0xff] %v663
    %696 = vmatpush.msra.mxu0 %v71
    %697 = vmatpush.msra.mxu0 %v70
    %698 = vmatpush.msra.mxu0 %v69
    %699 = vmatpush.msra.mxu0 %v68
    %700 = vmatpush.msra.mxu0 %v67
    %701 = vmatpush.msra.mxu0 %v66
    %702 = vmatpush.msra.mxu0 %v65
    %703 = vmatpush.msra.mxu0 %v64
    %704 = vmatpush.msra.mxu0 %v63
    %705 = vmatpush.msra.mxu0 %v62
    %706 = vmatpush.msra.mxu0 %v61
    %707 = vmatpush.msra.mxu0 %v60
    %708 = vmatpush.msra.mxu0 %v59
    %709 = vmatpush.msra.mxu0 %v58
    %710 = vmatpush.msra.mxu0 %v57
    %711 = vmatpush.msra.mxu0 %v56
    %712 = vmatmul.f32.gmra.mxu0 %v632
    %v713 = vpop.f32.mrf.mxu0
    %v714 = vadd.f32 0.0, %v713
    %715 = vmatmul.f32.gmra.mxu0 %v633
    %v716 = vpop.f32.mrf.mxu0
    %v717 = vadd.f32 0.0, %v716
    %718 = vmatmul.f32.gmra.mxu0 %v634
    %v719 = vpop.f32.mrf.mxu0
    %v720 = vadd.f32 0.0, %v719
    %721 = vmatmul.f32.gmra.mxu0 %v635
    %v722 = vpop.f32.mrf.mxu0
    %v723 = vadd.f32 0.0, %v722
    %724 = vmatmul.f32.gmra.mxu0 %v636
    %v725 = vpop.f32.mrf.mxu0
    %v726 = vadd.f32 0.0, %v725
    %727 = vmatmul.f32.gmra.mxu0 %v637
    %v728 = vpop.f32.mrf.mxu0
    %v729 = vadd.f32 0.0, %v728
    %730 = vmatmul.f32.gmra.mxu0 %v638
    %v731 = vpop.f32.mrf.mxu0
    %v732 = vadd.f32 0.0, %v731
    %733 = vmatmul.f32.gmra.mxu0 %v639
    %v734 = vpop.f32.mrf.mxu0
    %v735 = vadd.f32 0.0, %v734
    %736 = vmatmul.f32.gmra.mxu0 %v640
    %v737 = vpop.f32.mrf.mxu0
    %v738 = vadd.f32 0.0, %v737
    %739 = vmatmul.f32.gmra.mxu0 %v641
    %v740 = vpop.f32.mrf.mxu0
    %v741 = vadd.f32 0.0, %v740
    %742 = vmatmul.f32.gmra.mxu0 %v642
    %v743 = vpop.f32.mrf.mxu0
    %v744 = vadd.f32 0.0, %v743
    %745 = vmatmul.f32.gmra.mxu0 %v643
    %v746 = vpop.f32.mrf.mxu0
    %v747 = vadd.f32 0.0, %v746
    %748 = vmatmul.f32.gmra.mxu0 %v644
    %v749 = vpop.f32.mrf.mxu0
    %v750 = vadd.f32 0.0, %v749
    %751 = vmatmul.f32.gmra.mxu0 %v645
    %v752 = vpop.f32.mrf.mxu0
    %v753 = vadd.f32 0.0, %v752
    %754 = vmatmul.f32.gmra.mxu0 %v646
    %v755 = vpop.f32.mrf.mxu0
    %v756 = vadd.f32 0.0, %v755
    %757 = vmatmul.f32.gmra.mxu0 %v647
    %v758 = vpop.f32.mrf.mxu0
    %v759 = vadd.f32 0.0, %v758
    %760 = vdwg.mxu0
    %761 = vmatpush.msra.mxu0 %v87
    %762 = vmatpush.msra.mxu0 %v86
    %763 = vmatpush.msra.mxu0 %v85
    %764 = vmatpush.msra.mxu0 %v84
    %765 = vmatpush.msra.mxu0 %v83
    %766 = vmatpush.msra.mxu0 %v82
    %767 = vmatpush.msra.mxu0 %v81
    %768 = vmatpush.msra.mxu0 %v80
    %769 = vmatpush.msra.mxu0 %v79
    %770 = vmatpush.msra.mxu0 %v78
    %771 = vmatpush.msra.mxu0 %v77
    %772 = vmatpush.msra.mxu0 %v76
    %773 = vmatpush.msra.mxu0 %v75
    %774 = vmatpush.msra.mxu0 %v74
    %775 = vmatpush.msra.mxu0 %v73
    %776 = vmatpush.msra.mxu0 %v72
    %777 = vmatmul.f32.gmra.mxu0 %v648
    %v778 = vpop.f32.mrf.mxu0
    %v779 = vadd.f32 0.0, %v778
    %780 = vmatmul.f32.gmra.mxu0 %v649
    %v781 = vpop.f32.mrf.mxu0
    %v782 = vadd.f32 0.0, %v781
    %783 = vmatmul.f32.gmra.mxu0 %v650
    %v784 = vpop.f32.mrf.mxu0
    %v785 = vadd.f32 0.0, %v784
    %786 = vmatmul.f32.gmra.mxu0 %v651
    %v787 = vpop.f32.mrf.mxu0
    %v788 = vadd.f32 0.0, %v787
    %789 = vmatmul.f32.gmra.mxu0 %v652
    %v790 = vpop.f32.mrf.mxu0
    %v791 = vadd.f32 0.0, %v790
    %792 = vmatmul.f32.gmra.mxu0 %v653
    %v793 = vpop.f32.mrf.mxu0
    %v794 = vadd.f32 0.0, %v793
    %795 = vmatmul.f32.gmra.mxu0 %v654
    %v796 = vpop.f32.mrf.mxu0
    %v797 = vadd.f32 0.0, %v796
    %798 = vmatmul.f32.gmra.mxu0 %v655
    %v799 = vpop.f32.mrf.mxu0
    %v800 = vadd.f32 0.0, %v799
    %801 = vmatmul.f32.gmra.mxu0 %v656
    %v802 = vpop.f32.mrf.mxu0
    %v803 = vadd.f32 0.0, %v802
    %804 = vmatmul.f32.gmra.mxu0 %v657
    %v805 = vpop.f32.mrf.mxu0
    %v806 = vadd.f32 0.0, %v805
    %807 = vmatmul.f32.gmra.mxu0 %v658
    %v808 = vpop.f32.mrf.mxu0
    %v809 = vadd.f32 0.0, %v808
    %810 = vmatmul.f32.gmra.mxu0 %v659
    %v811 = vpop.f32.mrf.mxu0
    %v812 = vadd.f32 0.0, %v811
    %813 = vmatmul.f32.gmra.mxu0 %v660
    %v814 = vpop.f32.mrf.mxu0
    %v815 = vadd.f32 0.0, %v814
    %816 = vmatmul.f32.gmra.mxu0 %v661
    %v817 = vpop.f32.mrf.mxu0
    %v818 = vadd.f32 0.0, %v817
    %819 = vmatmul.f32.gmra.mxu0 %v662
    %v820 = vpop.f32.mrf.mxu0
    %v821 = vadd.f32 0.0, %v820
    %822 = vmatmul.f32.gmra.mxu0 %v663
    %v823 = vpop.f32.mrf.mxu0
    %v824 = vadd.f32 0.0, %v823
    %825 = vdwg.mxu0
    %v826 = vld [vmem:[%s2] sm:$0xff]
    %v827 = vld [vmem:[%s2 + $0x8] sm:$0xff]
    %v828 = vld [vmem:[%s2 + $0x10] sm:$0xff]
    %v829 = vld [vmem:[%s2 + $0x18] sm:$0xff]
    %v830 = vld [vmem:[%s2 + $0x20] sm:$0xff]
    %v831 = vld [vmem:[%s2 + $0x28] sm:$0xff]
    %v832 = vld [vmem:[%s2 + $0x30] sm:$0xff]
    %v833 = vld [vmem:[%s2 + $0x38] sm:$0xff]
    %vm834 = vcmask 523264
    %v836 = vsel %vm834, %v714, 0
    %v839 = vsel %vm834, %v717, 0
    %v842 = vsel %vm834, %v720, 0
    %v845 = vsel %vm834, %v723, 0
    %v848 = vsel %vm834, %v726, 0
    %v851 = vsel %vm834, %v729, 0
    %v854 = vsel %vm834, %v732, 0
    %v857 = vsel %vm834, %v735, 0
    %v860 = vsel %vm834, %v738, 0
    %v863 = vsel %vm834, %v741, 0
    %v866 = vsel %vm834, %v744, 0
    %v869 = vsel %vm834, %v747, 0
    %v872 = vsel %vm834, %v750, 0
    %v875 = vsel %vm834, %v753, 0
    %v878 = vsel %vm834, %v756, 0
    %v881 = vsel %vm834, %v759, 0
    %v884 = vsel %vm834, %v779, 0
    %v887 = vsel %vm834, %v782, 0
    %v890 = vsel %vm834, %v785, 0
    %v893 = vsel %vm834, %v788, 0
    %v896 = vsel %vm834, %v791, 0
    %v899 = vsel %vm834, %v794, 0
    %v902 = vsel %vm834, %v797, 0
    %v905 = vsel %vm834, %v800, 0
    %v908 = vsel %vm834, %v803, 0
    %v911 = vsel %vm834, %v806, 0
    %v914 = vsel %vm834, %v809, 0
    %v917 = vsel %vm834, %v812, 0
    %v920 = vsel %vm834, %v815, 0
    %v923 = vsel %vm834, %v818, 0
    %v926 = vsel %vm834, %v821, 0
    %v929 = vsel %vm834, %v824, 0
    %931 = vmatpush.msra.mxu0 0.0
    %932 = vmatpush.msra.mxu0 0.0
    %933 = vmatpush.msra.mxu0 0.0
    %934 = vmatpush.msra.mxu0 0.0
    %935 = vmatpush.msra.mxu0 0.0
    %936 = vmatpush.msra.mxu0 0.0
    %937 = vmatpush.msra.mxu0 0.0
    %938 = vmatpush.msra.mxu0 0.0
    %939 = vmatpush.msra.mxu0 %v833
    %940 = vmatpush.msra.mxu0 %v832
    %941 = vmatpush.msra.mxu0 %v831
    %942 = vmatpush.msra.mxu0 %v830
    %943 = vmatpush.msra.mxu0 %v829
    %944 = vmatpush.msra.mxu0 %v828
    %945 = vmatpush.msra.mxu0 %v827
    %946 = vmatpush.msra.mxu0 %v826
    %947 = vmatmul.f32.gmra.mxu0 %v836
    %v948 = vpop.f32.mrf.mxu0
    %v949 = vadd.f32 0.0, %v948
    %950 = vmatmul.f32.gmra.mxu0 %v839
    %v951 = vpop.f32.mrf.mxu0
    %v952 = vadd.f32 0.0, %v951
    %953 = vmatmul.f32.gmra.mxu0 %v842
    %v954 = vpop.f32.mrf.mxu0
    %v955 = vadd.f32 0.0, %v954
    %956 = vmatmul.f32.gmra.mxu0 %v845
    %v957 = vpop.f32.mrf.mxu0
    %v958 = vadd.f32 0.0, %v957
    %959 = vmatmul.f32.gmra.mxu0 %v848
    %v960 = vpop.f32.mrf.mxu0
    %v961 = vadd.f32 0.0, %v960
    %962 = vmatmul.f32.gmra.mxu0 %v851
    %v963 = vpop.f32.mrf.mxu0
    %v964 = vadd.f32 0.0, %v963
    %965 = vmatmul.f32.gmra.mxu0 %v854
    %v966 = vpop.f32.mrf.mxu0
    %v967 = vadd.f32 0.0, %v966
    %968 = vmatmul.f32.gmra.mxu0 %v857
    %v969 = vpop.f32.mrf.mxu0
    %v970 = vadd.f32 0.0, %v969
    %971 = vmatmul.f32.gmra.mxu0 %v860
    %v972 = vpop.f32.mrf.mxu0
    %v973 = vadd.f32 0.0, %v972
    %974 = vmatmul.f32.gmra.mxu0 %v863
    %v975 = vpop.f32.mrf.mxu0
    %v976 = vadd.f32 0.0, %v975
    %977 = vmatmul.f32.gmra.mxu0 %v866
    %v978 = vpop.f32.mrf.mxu0
    %v979 = vadd.f32 0.0, %v978
    %980 = vmatmul.f32.gmra.mxu0 %v869
    %v981 = vpop.f32.mrf.mxu0
    %v982 = vadd.f32 0.0, %v981
    %983 = vmatmul.f32.gmra.mxu0 %v872
    %v984 = vpop.f32.mrf.mxu0
    %v985 = vadd.f32 0.0, %v984
    %986 = vmatmul.f32.gmra.mxu0 %v875
    %v987 = vpop.f32.mrf.mxu0
    %v988 = vadd.f32 0.0, %v987
    %989 = vmatmul.f32.gmra.mxu0 %v878
    %v990 = vpop.f32.mrf.mxu0
    %v991 = vadd.f32 0.0, %v990
    %992 = vmatmul.f32.gmra.mxu0 %v881
    %v993 = vpop.f32.mrf.mxu0
    %v994 = vadd.f32 0.0, %v993
    %995 = vmatmul.f32.gmra.mxu0 %v884
    %v996 = vpop.f32.mrf.mxu0
    %v997 = vadd.f32 0.0, %v996
    %998 = vmatmul.f32.gmra.mxu0 %v887
    %v999 = vpop.f32.mrf.mxu0
    %v1000 = vadd.f32 0.0, %v999
    %1001 = vmatmul.f32.gmra.mxu0 %v890
    %v1002 = vpop.f32.mrf.mxu0
    %v1003 = vadd.f32 0.0, %v1002
    %1004 = vmatmul.f32.gmra.mxu0 %v893
    %v1005 = vpop.f32.mrf.mxu0
    %v1006 = vadd.f32 0.0, %v1005
    %1007 = vmatmul.f32.gmra.mxu0 %v896
    %v1008 = vpop.f32.mrf.mxu0
    %v1009 = vadd.f32 0.0, %v1008
    %1010 = vmatmul.f32.gmra.mxu0 %v899
    %v1011 = vpop.f32.mrf.mxu0
    %v1012 = vadd.f32 0.0, %v1011
    %1013 = vmatmul.f32.gmra.mxu0 %v902
    %v1014 = vpop.f32.mrf.mxu0
    %v1015 = vadd.f32 0.0, %v1014
    %1016 = vmatmul.f32.gmra.mxu0 %v905
    %v1017 = vpop.f32.mrf.mxu0
    %v1018 = vadd.f32 0.0, %v1017
    %1019 = vmatmul.f32.gmra.mxu0 %v908
    %v1020 = vpop.f32.mrf.mxu0
    %v1021 = vadd.f32 0.0, %v1020
    %1022 = vmatmul.f32.gmra.mxu0 %v911
    %v1023 = vpop.f32.mrf.mxu0
    %v1024 = vadd.f32 0.0, %v1023
    %1025 = vmatmul.f32.gmra.mxu0 %v914
    %v1026 = vpop.f32.mrf.mxu0
    %v1027 = vadd.f32 0.0, %v1026
    %1028 = vmatmul.f32.gmra.mxu0 %v917
    %v1029 = vpop.f32.mrf.mxu0
    %v1030 = vadd.f32 0.0, %v1029
    %1031 = vmatmul.f32.gmra.mxu0 %v920
    %v1032 = vpop.f32.mrf.mxu0
    %v1033 = vadd.f32 0.0, %v1032
    %1034 = vmatmul.f32.gmra.mxu0 %v923
    %v1035 = vpop.f32.mrf.mxu0
    %v1036 = vadd.f32 0.0, %v1035
    %1037 = vmatmul.f32.gmra.mxu0 %v926
    %v1038 = vpop.f32.mrf.mxu0
    %v1039 = vadd.f32 0.0, %v1038
    %1040 = vmatmul.f32.gmra.mxu0 %v929
    %v1041 = vpop.f32.mrf.mxu0
    %v1042 = vadd.f32 0.0, %v1041
    %1043 = vdwg.mxu0
    %v1044 = vadd.f32 %v949, %v952
    %v1045 = vadd.f32 %v1044, %v955
    %v1046 = vadd.f32 %v1045, %v958
    %v1047 = vadd.f32 %v1046, %v961
    %v1048 = vadd.f32 %v1047, %v964
    %v1049 = vadd.f32 %v1048, %v967
    %v1050 = vadd.f32 %v1049, %v970
    %v1051 = vadd.f32 %v1050, %v973
    %v1052 = vadd.f32 %v1051, %v976
    %v1053 = vadd.f32 %v1052, %v979
    %v1054 = vadd.f32 %v1053, %v982
    %v1055 = vadd.f32 %v1054, %v985
    %v1056 = vadd.f32 %v1055, %v988
    %v1057 = vadd.f32 %v1056, %v991
    %v1058 = vadd.f32 %v1057, %v994
    %v1059 = vadd.f32 %v1058, %v997
    %v1060 = vadd.f32 %v1059, %v1000
    %v1061 = vadd.f32 %v1060, %v1003
    %v1062 = vadd.f32 %v1061, %v1006
    %v1063 = vadd.f32 %v1062, %v1009
    %v1064 = vadd.f32 %v1063, %v1012
    %v1065 = vadd.f32 %v1064, %v1015
    %v1066 = vadd.f32 %v1065, %v1018
    %v1067 = vadd.f32 %v1066, %v1021
    %v1068 = vadd.f32 %v1067, %v1024
    %v1069 = vadd.f32 %v1068, %v1027
    %v1070 = vadd.f32 %v1069, %v1030
    %v1071 = vadd.f32 %v1070, %v1033
    %v1072 = vadd.f32 %v1071, %v1036
    %v1073 = vadd.f32 %v1072, %v1039
    %v1074 = vadd.f32 %v1073, %v1042
    %v1075 = vrot.slane %v1074, 4
    %v1076 = vadd.f32 %v1074, %v1075
    %v1077 = vrot.slane %v1076, 2
    %v1078 = vadd.f32 %v1076, %v1077
    %v1079 = vrot.slane %v1078, 1
    %v1080 = vadd.f32 %v1078, %v1079
    %v1081 = vmul.f32 %v949, %v949
    %v1082 = vmul.f32 %v952, %v952
    %v1083 = vmul.f32 %v955, %v955
    %v1084 = vmul.f32 %v958, %v958
    %v1085 = vmul.f32 %v961, %v961
    %v1086 = vmul.f32 %v964, %v964
    %v1087 = vmul.f32 %v967, %v967
    %v1088 = vmul.f32 %v970, %v970
    %v1089 = vmul.f32 %v973, %v973
    %v1090 = vmul.f32 %v976, %v976
    %v1091 = vmul.f32 %v979, %v979
    %v1092 = vmul.f32 %v982, %v982
    %v1093 = vmul.f32 %v985, %v985
    %v1094 = vmul.f32 %v988, %v988
    %v1095 = vmul.f32 %v991, %v991
    %v1096 = vmul.f32 %v994, %v994
    %v1097 = vmul.f32 %v997, %v997
    %v1098 = vmul.f32 %v1000, %v1000
    %v1099 = vmul.f32 %v1003, %v1003
    %v1100 = vmul.f32 %v1006, %v1006
    %v1101 = vmul.f32 %v1009, %v1009
    %v1102 = vmul.f32 %v1012, %v1012
    %v1103 = vmul.f32 %v1015, %v1015
    %v1104 = vmul.f32 %v1018, %v1018
    %v1105 = vmul.f32 %v1021, %v1021
    %v1106 = vmul.f32 %v1024, %v1024
    %v1107 = vmul.f32 %v1027, %v1027
    %v1108 = vmul.f32 %v1030, %v1030
    %v1109 = vmul.f32 %v1033, %v1033
    %v1110 = vmul.f32 %v1036, %v1036
    %v1111 = vmul.f32 %v1039, %v1039
    %v1112 = vmul.f32 %v1042, %v1042
    %v1113 = vadd.f32 %v1081, %v1082
    %v1114 = vadd.f32 %v1113, %v1083
    %v1115 = vadd.f32 %v1114, %v1084
    %v1116 = vadd.f32 %v1115, %v1085
    %v1117 = vadd.f32 %v1116, %v1086
    %v1118 = vadd.f32 %v1117, %v1087
    %v1119 = vadd.f32 %v1118, %v1088
    %v1120 = vadd.f32 %v1119, %v1089
    %v1121 = vadd.f32 %v1120, %v1090
    %v1122 = vadd.f32 %v1121, %v1091
    %v1123 = vadd.f32 %v1122, %v1092
    %v1124 = vadd.f32 %v1123, %v1093
    %v1125 = vadd.f32 %v1124, %v1094
    %v1126 = vadd.f32 %v1125, %v1095
    %v1127 = vadd.f32 %v1126, %v1096
    %v1128 = vadd.f32 %v1127, %v1097
    %v1129 = vadd.f32 %v1128, %v1098
    %v1130 = vadd.f32 %v1129, %v1099
    %v1131 = vadd.f32 %v1130, %v1100
    %v1132 = vadd.f32 %v1131, %v1101
    %v1133 = vadd.f32 %v1132, %v1102
    %v1134 = vadd.f32 %v1133, %v1103
    %v1135 = vadd.f32 %v1134, %v1104
    %v1136 = vadd.f32 %v1135, %v1105
    %v1137 = vadd.f32 %v1136, %v1106
    %v1138 = vadd.f32 %v1137, %v1107
    %v1139 = vadd.f32 %v1138, %v1108
    %v1140 = vadd.f32 %v1139, %v1109
    %v1141 = vadd.f32 %v1140, %v1110
    %v1142 = vadd.f32 %v1141, %v1111
    %v1143 = vadd.f32 %v1142, %v1112
    %v1144 = vrot.slane %v1143, 4
    %v1145 = vadd.f32 %v1143, %v1144
    %v1146 = vrot.slane %v1145, 2
    %v1147 = vadd.f32 %v1145, %v1146
    %v1148 = vrot.slane %v1147, 1
    %v1149 = vadd.f32 %v1147, %v1148
    %v1150 = vmul.f32 %v1080, 0.00390625
    %v1151 = vmul.f32 %v1149, 0.00390625
    %v1152 = vmul.f32 %v1150, %v1150
    %v1153 = vsub.f32 %v1151, %v1152
    %v1154 = vld [vmem:[%s3] sm:$0x1]
    %v1155 = vadd.f32 %v1153, 1e-05
    %v1156 = vrsqrt.pop %v1155
    %v1157 = vmul.f32 %v1156, %v1155
    %v1158 = vmul.f32 %v1157, %v1156
    %v1159 = vmul.f32 0.5, %v1158
    %v1160 = vsub.f32 1.5, %v1159
    %v1161 = vmul.f32 %v1156, %v1160
    %vm1162 = vweird.f32 %v1155
    %vm1163 = vweird.f32 %v1156
    %vm1164 = vmor %vm1162, %vm1163
    %v1165 = vsel %vm1164, %v1156, %v1161
    %v1166 = vmul.f32 %v1154, %v1165
    %v1167 = vld [vmem:[%s4] sm:$0x1]
    %v1168 = vmul.f32 %v1150, %v1166
    %v1169 = vsub.f32 %v1167, %v1168
    %v1171 = vperm.slane %v1166, 0
    %v1173 = vmul.f32 %v949, %v1171
    %v1174 = vmul.f32 %v952, %v1171
    %v1175 = vmul.f32 %v955, %v1171
    %v1176 = vmul.f32 %v958, %v1171
    %v1177 = vmul.f32 %v961, %v1171
    %v1178 = vmul.f32 %v964, %v1171
    %v1179 = vmul.f32 %v967, %v1171
    %v1180 = vmul.f32 %v970, %v1171
    %v1181 = vmul.f32 %v973, %v1171
    %v1182 = vmul.f32 %v976, %v1171
    %v1183 = vmul.f32 %v979, %v1171
    %v1184 = vmul.f32 %v982, %v1171
    %v1185 = vmul.f32 %v985, %v1171
    %v1186 = vmul.f32 %v988, %v1171
    %v1187 = vmul.f32 %v991, %v1171
    %v1188 = vmul.f32 %v994, %v1171
    %v1189 = vmul.f32 %v997, %v1171
    %v1190 = vmul.f32 %v1000, %v1171
    %v1191 = vmul.f32 %v1003, %v1171
    %v1192 = vmul.f32 %v1006, %v1171
    %v1193 = vmul.f32 %v1009, %v1171
    %v1194 = vmul.f32 %v1012, %v1171
    %v1195 = vmul.f32 %v1015, %v1171
    %v1196 = vmul.f32 %v1018, %v1171
    %v1197 = vmul.f32 %v1021, %v1171
    %v1198 = vmul.f32 %v1024, %v1171
    %v1199 = vmul.f32 %v1027, %v1171
    %v1200 = vmul.f32 %v1030, %v1171
    %v1201 = vmul.f32 %v1033, %v1171
    %v1202 = vmul.f32 %v1036, %v1171
    %v1203 = vmul.f32 %v1039, %v1171
    %v1204 = vmul.f32 %v1042, %v1171
    %v1206 = vperm.slane %v1169, 0
    %v1208 = vadd.f32 %v1173, %v1206
    %v1209 = vadd.f32 %v1174, %v1206
    %v1210 = vadd.f32 %v1175, %v1206
    %v1211 = vadd.f32 %v1176, %v1206
    %v1212 = vadd.f32 %v1177, %v1206
    %v1213 = vadd.f32 %v1178, %v1206
    %v1214 = vadd.f32 %v1179, %v1206
    %v1215 = vadd.f32 %v1180, %v1206
    %v1216 = vadd.f32 %v1181, %v1206
    %v1217 = vadd.f32 %v1182, %v1206
    %v1218 = vadd.f32 %v1183, %v1206
    %v1219 = vadd.f32 %v1184, %v1206
    %v1220 = vadd.f32 %v1185, %v1206
    %v1221 = vadd.f32 %v1186, %v1206
    %v1222 = vadd.f32 %v1187, %v1206
    %v1223 = vadd.f32 %v1188, %v1206
    %v1224 = vadd.f32 %v1189, %v1206
    %v1225 = vadd.f32 %v1190, %v1206
    %v1226 = vadd.f32 %v1191, %v1206
    %v1227 = vadd.f32 %v1192, %v1206
    %v1228 = vadd.f32 %v1193, %v1206
    %v1229 = vadd.f32 %v1194, %v1206
    %v1230 = vadd.f32 %v1195, %v1206
    %v1231 = vadd.f32 %v1196, %v1206
    %v1232 = vadd.f32 %v1197, %v1206
    %v1233 = vadd.f32 %v1198, %v1206
    %v1234 = vadd.f32 %v1199, %v1206
    %v1235 = vadd.f32 %v1200, %v1206
    %v1236 = vadd.f32 %v1201, %v1206
    %v1237 = vadd.f32 %v1202, %v1206
    %v1238 = vadd.f32 %v1203, %v1206
    %v1239 = vadd.f32 %v1204, %v1206
    %1240 = vst [vmem:[#allocation2] sm:$0xff] %v1208
    %1241 = vst [vmem:[#allocation2 + $0x8] sm:$0xff] %v1209
    %1242 = vst [vmem:[#allocation2 + $0x10] sm:$0xff] %v1210
    %1243 = vst [vmem:[#allocation2 + $0x18] sm:$0xff] %v1211
    %1244 = vst [vmem:[#allocation2 + $0x20] sm:$0xff] %v1212
    %1245 = vst [vmem:[#allocation2 + $0x28] sm:$0xff] %v1213
    %1246 = vst [vmem:[#allocation2 + $0x30] sm:$0xff] %v1214
    %1247 = vst [vmem:[#allocation2 + $0x38] sm:$0xff] %v1215
    %1248 = vst [vmem:[#allocation2 + $0x40] sm:$0xff] %v1216
    %1249 = vst [vmem:[#allocation2 + $0x48] sm:$0xff] %v1217
    %1250 = vst [vmem:[#allocation2 + $0x50] sm:$0xff] %v1218
    %1251 = vst [vmem:[#allocation2 + $0x58] sm:$0xff] %v1219
    %1252 = vst [vmem:[#allocation2 + $0x60] sm:$0xff] %v1220
    %1253 = vst [vmem:[#allocation2 + $0x68] sm:$0xff] %v1221
    %1254 = vst [vmem:[#allocation2 + $0x70] sm:$0xff] %v1222
    %1255 = vst [vmem:[#allocation2 + $0x78] sm:$0xff] %v1223
    %1256 = vst [vmem:[#allocation2 + $0x80] sm:$0xff] %v1224
    %1257 = vst [vmem:[#allocation2 + $0x88] sm:$0xff] %v1225
    %1258 = vst [vmem:[#allocation2 + $0x90] sm:$0xff] %v1226
    %1259 = vst [vmem:[#allocation2 + $0x98] sm:$0xff] %v1227
    %1260 = vst [vmem:[#allocation2 + $0xa0] sm:$0xff] %v1228
    %1261 = vst [vmem:[#allocation2 + $0xa8] sm:$0xff] %v1229
    %1262 = vst [vmem:[#allocation2 + $0xb0] sm:$0xff] %v1230
    %1263 = vst [vmem:[#allocation2 + $0xb8] sm:$0xff] %v1231
    %1264 = vst [vmem:[#allocation2 + $0xc0] sm:$0xff] %v1232
    %1265 = vst [vmem:[#allocation2 + $0xc8] sm:$0xff] %v1233
    %1266 = vst [vmem:[#allocation2 + $0xd0] sm:$0xff] %v1234
    %1267 = vst [vmem:[#allocation2 + $0xd8] sm:$0xff] %v1235
    %1268 = vst [vmem:[#allocation2 + $0xe0] sm:$0xff] %v1236
    %1269 = vst [vmem:[#allocation2 + $0xe8] sm:$0xff] %v1237
    %1270 = vst [vmem:[#allocation2 + $0xf0] sm:$0xff] %v1238
    %1271 = vst [vmem:[#allocation2 + $0xf8] sm:$0xff] %v1239
    // Predicated region
    $region22: #{tpu_custom_call.1} parent=1 // pred_check
      _
    $region23: #{tpu_custom_call.1} parent=1 // pred_check_branch
      %1273 = sbr.rel (0) target = $region25
    $region24: #{tpu_custom_call.1} parent=1 // pred_region
      %1275 = vsyncadd [#allocation3], 0
      %s1276 = sshll.u32 [#allocation2], 4
      %s1277 = int_to_ptr.vmem [resolvable:$true] %s1276
      %s1278 = sshll.u32 %s5, 4
      %s1279 = int_to_ptr.hbm [resolvable:$true] %s1278
      %1284 = dma.vmem_to_hbm [thread:$0]  %s1277, 4096, %s1279, [#allocation3], 128, 128, 8
    $region25: #{tpu_custom_call.1} parent=1 // pred_fallthru
      _
    // Predicated region
    $region26: #{tpu_custom_call.1} parent=1 // pred_check
      _
    $region27: #{tpu_custom_call.1} parent=1 // pred_check_branch
      %1286 = sbr.rel (0) target = $region29
    $region28: #{tpu_custom_call.1} parent=1 // pred_region
      %1288 = vsyncadd [#allocation5], 0
      %s1289 = sshll.u32 [#allocation4], 4
      %s1290 = int_to_ptr.vmem [resolvable:$true] %s1289
      %s1291 = sshll.u32 %s6, 4
      %s1292 = int_to_ptr.hbm [resolvable:$true] %s1291
      %1297 = dma.vmem_to_hbm [thread:$0]  %s1290, 4096, %s1292, [#allocation5], 128, 128, 8
    $region29: #{tpu_custom_call.1} parent=1 // pred_fallthru
      _
    // Predicated region
    $region30: #{tpu_custom_call.1} parent=1 // pred_check
      _
    $region31: #{tpu_custom_call.1} parent=1 // pred_check_branch
      %1299 = sbr.rel (0) target = $region33
    $region32: #{tpu_custom_call.1} parent=1 // pred_region
      %1301 = dma.done [#allocation3], 4096
    $region33: #{tpu_custom_call.1} parent=1 // pred_fallthru
      _
    // Predicated region
    $region34: #{tpu_custom_call.1} parent=1 // pred_check
      _
    $region35: #{tpu_custom_call.1} parent=1 // pred_check_branch
      %1303 = sbr.rel (0) target = $region37
    $region36: #{tpu_custom_call.1} parent=1 // pred_region
      %1305 = dma.done [#allocation5], 4096
    $region37: #{tpu_custom_call.1} parent=1 // pred_fallthru
      _
    %1306 = vsyncpa [#allocation3], 1
    %1307 = vsyncpa [#allocation5], 1

</llo_original>
